<compile_context>
chip_gen: v7x
topology: tpu7x:2x2x1
jax: 0.10.0
libtpu: 0.0.40
codegen_flags: <defaults>
</compile_context>

<pallas_src>
import math

import jax
import jax.numpy as jnp
from jax.experimental import pallas as pl
from jax.experimental.pallas import tpu as pltpu


def _gnn_layer_kernel(self_ref, agg_ref, his_ref, w1_ref, w2_ref, w3_ref, out_ref):
    """One packed row-tile: three lane-dense MXU matmuls (f32 accumulate) + ReLU.

    self_ref: (TILE_M, pack*out_size)
    agg_ref:  (TILE_M, pack*out_size)
    his_ref:  (TILE_M, pack*his_dim)
    w1_ref:   (pack*out_size, pack*out_size)  block-diag(W[:, :out_size].T)   (VMEM-resident)
    w2_ref:   (pack*out_size, pack*out_size)  block-diag(W[:, out:2*out].T)
    w3_ref:   (pack*his_dim,  pack*out_size)  block-diag(W[:, 2*out:].T)
    out_ref:  (TILE_M, pack*out_size)
    """
    acc = jnp.dot(self_ref[...], w1_ref[...], preferred_element_type=jnp.float32)
    acc = acc + jnp.dot(agg_ref[...], w2_ref[...], preferred_element_type=jnp.float32)
    acc = acc + jnp.dot(his_ref[...], w3_ref[...], preferred_element_type=jnp.float32)
    out_ref[...] = jnp.maximum(acc, 0.0).astype(out_ref.dtype)


def _round_up(x, m):
    return (x + m - 1) // m * m


def gnn_layer_forward(self_feats, aggregate_feats, his_feats, weight, *, block_rows=8192):
    """Pallas equivalent of GNNLayer.forward.

    self_feats:      (N, out_size)
    aggregate_feats: (N, out_size)
    his_feats:       (N, num_layers * out_size)
    weight:          (out_size, dim) with dim = (num_layers + 2) * out_size
    block_rows:      row-tile size in *original* rows for f32 (scaled up for
                     narrower dtypes); rounded to the sublane multiple.
    returns:         (N, out_size) in the activations' dtype
    """
    n, out_size = self_feats.shape
    his_dim = his_feats.shape[1]
    dim = weight.shape[1]
    assert aggregate_feats.shape == (n, out_size)
    assert his_feats.shape[0] == n
    assert weight.shape == (out_size, dim)
    assert his_dim == dim - 2 * out_size

    act_dtype = self_feats.dtype
    itemsize = jnp.dtype(act_dtype).itemsize

    # --- lane-dense pack factor --------------------------------------------
    if out_size % 128 == 0:
        pack = 1
    else:
        pack = 128 // math.gcd(out_size, 128)
        # Keep the block-diagonal weights small (they are VMEM-resident);
        # fall back to the unpacked layout for awkward out_size values.
        if (pack * his_dim) * (pack * out_size) * 4 > (4 << 20):
            pack = 1

    # Pad N to a multiple of the pack factor (only when needed).
    n_pad = _round_up(n, pack)
    if n_pad != n:
        pad = ((0, n_pad - n), (0, 0))
        self_feats = jnp.pad(self_feats, pad)
        aggregate_feats = jnp.pad(aggregate_feats, pad)
        his_feats = jnp.pad(his_feats, pad)

    m = n_pad // pack
    s_cols = pack * out_size
    h_cols = pack * his_dim

    # Free row-major reshapes: no HBM data movement, just lane-dense views.
    sf = self_feats.reshape(m, s_cols)
    af = aggregate_feats.reshape(m, s_cols)
    hf = his_feats.reshape(m, h_cols)

    # --- tiny weights: split, transpose, block-diagonalize at trace time ----
    w1_t = weight[:, :out_size].T
    w2_t = weight[:, out_size:2 * out_size].T
    w3_t = weight[:, 2 * out_size:].T
    if pack > 1:
        eye = jnp.eye(pack, dtype=weight.dtype)
        w1_t = jnp.kron(eye, w1_t)   # (s_cols, s_cols)
        w2_t = jnp.kron(eye, w2_t)   # (s_cols, s_cols)
        w3_t = jnp.kron(eye, w3_t)   # (h_cols, s_cols)
    w1_t = w1_t.astype(act_dtype)
    w2_t = w2_t.astype(act_dtype)
    w3_t = w3_t.astype(act_dtype)

    # --- row-tile sizing -----------------------------------------------------
    sub = 8 * max(1, 4 // itemsize)                 # sublane multiple: 8 f32, 16 bf16
    cap_rows = block_rows * max(1, 4 // itemsize)   # narrower dtype -> bigger tiles
    cap_m = max(_round_up(max(cap_rows // pack, 1), sub), sub)

    if m <= sub:
        tile_m = m                                  # single full-extent tile
    else:
        tile_m = min(cap_m, _round_up(m, sub))
        # Ensure >=2 tiles whenever rows allow, so the "parallel" axis can
        # feed both of v7x's TensorCores (and megacore on v5e/v6e).
        if pl.cdiv(m, tile_m) < 2 and m >= 2 * sub:
            tile_m = _round_up(pl.cdiv(m, 2), sub)

    grid = (pl.cdiv(m, tile_m),)

    def row_spec(cols):
        return pl.BlockSpec((tile_m, cols), lambda i: (i, 0))

    def resident_spec(rows, cols):
        return pl.BlockSpec((rows, cols), lambda i: (0, 0))

    out_packed = pl.pallas_call(
        _gnn_layer_kernel,
        out_shape=jax.ShapeDtypeStruct((m, s_cols), act_dtype),
        grid_spec=pl.GridSpec(
            grid=grid,
            in_specs=[
                row_spec(s_cols),                # self_feats  (packed)
                row_spec(s_cols),                # aggregate_feats (packed)
                row_spec(h_cols),                # his_feats   (packed)
                resident_spec(s_cols, s_cols),   # block-diag W1^T
                resident_spec(s_cols, s_cols),   # block-diag W2^T
                resident_spec(h_cols, s_cols),   # block-diag W3^T
            ],
            out_specs=row_spec(s_cols),
        ),
        compiler_params=pltpu.CompilerParams(
            dimension_semantics=("parallel",),   # independent row tiles
        ),
    )(sf, af, hf, w1_t, w2_t, w3_t)

    out = out_packed.reshape(n_pad, out_size)
    return out if n_pad == n else out[:n]


def xavier_uniform(key, shape, dtype=jnp.float32):
    """Matches torch.nn.init.xavier_uniform_ for a 2-D (fan_out, fan_in) weight."""
    fan_out, fan_in = shape
    bound = math.sqrt(6.0 / (fan_in + fan_out))
    return jax.random.uniform(key, shape, dtype, minval=-bound, maxval=bound)


if __name__ == "__main__":
    # Shapes consistent with GNNLayer(out_size=32, num_layers=2).
    out_size = 32
    num_layers = 2
    dim = (num_layers + 2) * out_size  # 128

    key = jax.random.PRNGKey(0)
    k_w, k_self, k_agg, k_his = jax.random.split(key, 4)
    weight = xavier_uniform(k_w, (out_size, dim))  # (32, 128)

    def reference(sf, af, hf, w):
        combined = jnp.concatenate([sf, af, hf], axis=1)
        return jnp.maximum(combined @ w.T, 0.0)

    n = 1024
    self_feats = jax.random.normal(k_self, (n, out_size), jnp.float32)
    aggregate_feats = jax.random.normal(k_agg, (n, out_size), jnp.float32)
    his_feats = jax.random.normal(k_his, (n, num_layers * out_size), jnp.float32)
    ref = reference(self_feats, aggregate_feats, his_feats, weight)

    # Case 1: f32, lane-dense packed path, >=2 row tiles.
    out = jax.block_until_ready(
        gnn_layer_forward(self_feats, aggregate_feats, his_feats, weight)
    )
    assert out.shape == (n, out_size)
    assert jnp.allclose(out, ref, atol=1e-5, rtol=1e-5)

    # Case 2: N not a multiple of the pack factor (exercises the pad/slice path).
    n2 = 1022
    out2 = jax.block_until_ready(
        gnn_layer_forward(
            self_feats[:n2], aggregate_feats[:n2], his_feats[:n2], weight
        )
    )
    assert out2.shape == (n2, out_size)
    assert jnp.allclose(out2, ref[:n2], atol=1e-5, rtol=1e-5)

    # Case 3: tiny single-tile case (N=16 -> 4 packed rows, full-extent block).
    n3 = 16
    out3 = jax.block_until_ready(
        gnn_layer_forward(
            self_feats[:n3], aggregate_feats[:n3], his_feats[:n3], weight
        )
    )
    assert out3.shape == (n3, out_size)
    assert jnp.allclose(out3, ref[:n3], atol=1e-5, rtol=1e-5)

    # Case 4: bf16 activations (recommended path: halves HBM traffic for this
    # purely memory-bound layer); accumulation + ReLU stay f32 in-kernel.
    out_bf16 = jax.block_until_ready(
        gnn_layer_forward(
            self_feats.astype(jnp.bfloat16),
            aggregate_feats.astype(jnp.bfloat16),
            his_feats.astype(jnp.bfloat16),
            weight,
        )
    )
    assert out_bf16.dtype == jnp.bfloat16
    assert jnp.allclose(out_bf16.astype(jnp.float32), ref, atol=5e-2, rtol=5e-2)

    print("KERNEL_OK")
</pallas_src>

<mosaic_0001>
module attributes {stable_mosaic.version = 11 : i64} {
  func.func @_gnn_layer_kernel(%arg0: i32, %arg1: memref<128x128xf32, #tpu.memory_space<vmem>>, %arg2: memref<128x128xf32, #tpu.memory_space<vmem>>, %arg3: memref<128x256xf32, #tpu.memory_space<vmem>>, %arg4: memref<128x128xf32, #tpu.memory_space<vmem>>, %arg5: memref<128x128xf32, #tpu.memory_space<vmem>>, %arg6: memref<256x128xf32, #tpu.memory_space<vmem>>, %arg7: memref<128x128xf32, #tpu.memory_space<vmem>>) attributes {dimension_semantics = [#tpu.dimension_semantics<parallel>], iteration_bounds = array<i64: 2>, scalar_prefetch = 0 : i64, scratch_operands = 0 : i64, tpu.core_type = #tpu.core_type<tc>, window_params = [{transform_indices = @transform_0, window_bounds = array<i64: 128, 128>}, {transform_indices = @transform_1, window_bounds = array<i64: 128, 128>}, {transform_indices = @transform_2, window_bounds = array<i64: 128, 256>}, {pipeline_mode = #tpu.pipeline_mode<synchronous>, transform_indices = @transform_3, window_bounds = array<i64: 128, 128>}, {pipeline_mode = #tpu.pipeline_mode<synchronous>, transform_indices = @transform_4, window_bounds = array<i64: 128, 128>}, {pipeline_mode = #tpu.pipeline_mode<synchronous>, transform_indices = @transform_5, window_bounds = array<i64: 256, 128>}, {transform_indices = @transform_6, window_bounds = array<i64: 128, 128>}]} {
    %c0 = arith.constant 0 : index
    %c0_0 = arith.constant 0 : index
    %0 = vector.load %arg1[%c0, %c0_0] : memref<128x128xf32, #tpu.memory_space<vmem>>, vector<128x128xf32>
    %c0_1 = arith.constant 0 : index
    %c0_2 = arith.constant 0 : index
    %1 = vector.load %arg4[%c0_1, %c0_2] : memref<128x128xf32, #tpu.memory_space<vmem>>, vector<128x128xf32>
    %cst = arith.constant dense<0.000000e+00> : vector<128x128xf32>
    %2 = tpu.matmul %0, %1, %cst {dimension_numbers = #tpu.dot_dimension_numbers<[1], [0], [0], [1], [0, 0, 1, 1], [], []>} : vector<128x128xf32>, vector<128x128xf32>, vector<128x128xf32> -> vector<128x128xf32>
    %c0_3 = arith.constant 0 : index
    %c0_4 = arith.constant 0 : index
    %3 = vector.load %arg2[%c0_3, %c0_4] : memref<128x128xf32, #tpu.memory_space<vmem>>, vector<128x128xf32>
    %c0_5 = arith.constant 0 : index
    %c0_6 = arith.constant 0 : index
    %4 = vector.load %arg5[%c0_5, %c0_6] : memref<128x128xf32, #tpu.memory_space<vmem>>, vector<128x128xf32>
    %cst_7 = arith.constant dense<0.000000e+00> : vector<128x128xf32>
    %5 = tpu.matmul %3, %4, %cst_7 {dimension_numbers = #tpu.dot_dimension_numbers<[1], [0], [0], [1], [0, 0, 1, 1], [], []>} : vector<128x128xf32>, vector<128x128xf32>, vector<128x128xf32> -> vector<128x128xf32>
    %6 = arith.addf %2, %5 : vector<128x128xf32>
    %c0_8 = arith.constant 0 : index
    %c0_9 = arith.constant 0 : index
    %7 = vector.load %arg3[%c0_8, %c0_9] : memref<128x256xf32, #tpu.memory_space<vmem>>, vector<128x256xf32>
    %c0_10 = arith.constant 0 : index
    %c0_11 = arith.constant 0 : index
    %8 = vector.load %arg6[%c0_10, %c0_11] : memref<256x128xf32, #tpu.memory_space<vmem>>, vector<256x128xf32>
    %cst_12 = arith.constant dense<0.000000e+00> : vector<128x128xf32>
    %9 = tpu.matmul %7, %8, %cst_12 {dimension_numbers = #tpu.dot_dimension_numbers<[1], [0], [0], [1], [0, 0, 1, 1], [], []>} : vector<128x256xf32>, vector<256x128xf32>, vector<128x128xf32> -> vector<128x128xf32>
    %10 = arith.addf %6, %9 : vector<128x128xf32>
    %cst_13 = arith.constant 0.000000e+00 : f32
    %11 = vector.broadcast %cst_13 : f32 to vector<128x128xf32>
    %12 = arith.maximumf %10, %11 : vector<128x128xf32>
    %c0_14 = arith.constant 0 : index
    %c0_15 = arith.constant 0 : index
    %13 = vector.load %arg7[%c0_14, %c0_15] : memref<128x128xf32, #tpu.memory_space<vmem>>, vector<128x128xf32>
    tpu.vector_store %arg7[%c0_14, %c0_15], %12 {strides = array<i32>} : memref<128x128xf32, #tpu.memory_space<vmem>>, vector<128x128xf32>,
    return
  }
  func.func @transform_0(%arg0: i32) -> (i32, i32) {
    %c0_i32 = arith.constant 0 : i32
    %c0_i32_0 = arith.constant 0 : i32
    return %arg0, %c0_i32 : i32, i32
  }
  func.func @transform_1(%arg0: i32) -> (i32, i32) {
    %c0_i32 = arith.constant 0 : i32
    %c0_i32_0 = arith.constant 0 : i32
    return %arg0, %c0_i32 : i32, i32
  }
  func.func @transform_2(%arg0: i32) -> (i32, i32) {
    %c0_i32 = arith.constant 0 : i32
    %c0_i32_0 = arith.constant 0 : i32
    return %arg0, %c0_i32 : i32, i32
  }
  func.func @transform_3(%arg0: i32) -> (i32, i32) {
    %c0_i32 = arith.constant 0 : i32
    %c0_i32_0 = arith.constant 0 : i32
    %c0_i32_1 = arith.constant 0 : i32
    return %c0_i32, %c0_i32_0 : i32, i32
  }
  func.func @transform_4(%arg0: i32) -> (i32, i32) {
    %c0_i32 = arith.constant 0 : i32
    %c0_i32_0 = arith.constant 0 : i32
    %c0_i32_1 = arith.constant 0 : i32
    return %c0_i32, %c0_i32_0 : i32, i32
  }
  func.func @transform_5(%arg0: i32) -> (i32, i32) {
    %c0_i32 = arith.constant 0 : i32
    %c0_i32_0 = arith.constant 0 : i32
    %c0_i32_1 = arith.constant 0 : i32
    return %c0_i32, %c0_i32_0 : i32, i32
  }
  func.func @transform_6(%arg0: i32) -> (i32, i32) {
    %c0_i32 = arith.constant 0 : i32
    %c0_i32_0 = arith.constant 0 : i32
    return %arg0, %c0_i32 : i32, i32
  }
}

</mosaic_0001>

<llo_original>
// kernel: tpu_custom_call.1
$region0: #{tpu_custom_call.1}
  #allocation0 [shape = 'u32[]', space=smem, size = 0x4, offset = 0x4, fixed_abs, tag = 'smem constant byte address 0x4 - core index']
  #allocation1 [shape = 'u32[144,128]{1,0:T(1,128)}', space=vmem, size = 0x12000, scoped, tag = 'internal scratch']
  %s0 = inlined_call_operand.hbm [shape: f32[256,128], index: 0, kind: input, shape index: {}]
  %s1 = inlined_call_operand.hbm [shape: f32[256,128], index: 1, kind: input, shape index: {}]
  %s2 = inlined_call_operand.hbm [shape: f32[256,256], index: 2, kind: input, shape index: {}]
  %s3 = inlined_call_operand.hbm [shape: f32[128,128], index: 3, kind: input, shape index: {}]
  %s4 = inlined_call_operand.hbm [shape: f32[128,128], index: 4, kind: input, shape index: {}]
  %s5 = inlined_call_operand.hbm [shape: f32[256,128], index: 5, kind: input, shape index: {}]
  %s6 = inlined_call_operand.hbm [shape: f32[256,128], index: 6, kind: output, shape index: {}]
  %s7 = sld [smem:[#allocation0]]
  $region81: #{tpu_custom_call.1} parent=0
    _
  %s9 = ssub.s32 1, %s7
  %s10 = scalar_select 0, %s9, %s7
  $region1: #{tpu_custom_call.1} parent=0
    #allocation2 [shape = 'u8[131072]{0}', space=vmem, size = 0x20000, scoped, tag = 'input window, operand 0']
    #allocation3 [shape = 's32[2]{0}', space=sflag, size = 0x8, scoped, tag = 'scoped memory for tpu_custom_call.1']
    #allocation4 [shape = 's32[2]{0}', space=sflag, size = 0x8, scoped, tag = 'scoped memory for tpu_custom_call.1']
    #allocation5 [shape = 'u8[131072]{0}', space=vmem, size = 0x20000, scoped, tag = 'input window, operand 1']
    #allocation6 [shape = 's32[2]{0}', space=sflag, size = 0x8, scoped, tag = 'scoped memory for tpu_custom_call.1']
    #allocation7 [shape = 'u8[262144]{0}', space=vmem, size = 0x40000, scoped, tag = 'input window, operand 2']
    #allocation8 [shape = 'u8[65536]{0}', space=vmem, size = 0x10000, scoped, tag = 'input window, operand 3, single buffered']
    #allocation9 [shape = 's32[1]{0}', space=sflag, size = 0x4, scoped, tag = 'scoped memory for tpu_custom_call.1']
    #allocation10 [shape = 'u8[65536]{0}', space=vmem, size = 0x10000, scoped, tag = 'input window, operand 4, single buffered']
    #allocation11 [shape = 'u8[131072]{0}', space=vmem, size = 0x20000, scoped, tag = 'input window, operand 5, single buffered']
    #allocation12 [shape = 's32[1]{0}', space=sflag, size = 0x4, scoped, tag = 'scoped memory for tpu_custom_call.1']
    #allocation13 [shape = 'u8[131072]{0}', space=vmem, size = 0x20000, scoped, tag = 'output window, operand 0']
    %11 = vsyncpa [#allocation3], 0
    %s12 = scalar_lea.sflag [#allocation3], 1
    %13 = vsyncpa %s12, 0
    %14 = vsyncpa [#allocation6], 0
    %s15 = scalar_lea.sflag [#allocation6], 1
    %16 = vsyncpa %s15, 0
    %17 = vsyncpa [#allocation9], 0
    %18 = vsyncpa [#allocation12], 0
    %19 = vsyncpa [#allocation4], 0
    %s20 = scalar_lea.sflag [#allocation4], 1
    %21 = vsyncpa %s20, 0
    loop: start=0, step=1, limit=4
    $region2: #{tpu_custom_call.1} parent=1 // loop_pre_header
      _
    $region3: #{tpu_custom_call.1} parent=1 // loop_header
      %s23 = sphi 0, %s27
      %p24 = scmp.ge.s32.totalorder %s23, 4
      %s33 = sphi 0, %s35
      %s36 = sphi 0, %s33
      %s37 = sphi 0, %s36
      %s53 = sphi 0, %s37
      %s59 = sphi 0, %s61
      %s62 = sphi 0, %s59
      %s63 = sphi 0, %s62
      %s79 = sphi 0, %s63
      %s85 = sphi 0, %s87
      %s88 = sphi 0, %s85
      %s89 = sphi 0, %s88
      %s105 = sphi 0, %s89
      %s109 = sphi 0, %s109
      %s111 = sphi 0, %s109
      %s112 = sphi 0, %s111
      %s126 = sphi 0, %s112
      %s130 = sphi 0, %s130
      %s132 = sphi 0, %s130
      %s133 = sphi 0, %s132
      %s147 = sphi 0, %s133
      %s151 = sphi 0, %s151
      %s153 = sphi 0, %s151
      %s154 = sphi 0, %s153
      %s168 = sphi 0, %s154
      %s174 = sphi 0, %s176
      %s177 = sphi 0, %s174
      %s178 = sphi 0, %s177
      %s194 = sphi 0, %s178
    $region4: #{tpu_custom_call.1} parent=1 // loop_header_branch
      %26 = sbr.rel (%p24) target = $region8
    $region5: #{tpu_custom_call.1} parent=1 // loop_body
      %s28 = ssub.s32 %s23, 1
      %s29 = ssub.s32 %s23, 2
      %s30 = sadd.s32 %s23, 1
      %s31 = ssub.s32 %s23, %s30
      %p32 = scmp.eq.s32.totalorder %s31, 0
      %s34 = sadd.s32 %s33, 1
      %s35 = scalar_select %p32, %s33, %s34
      %p38 = pneg %p32
      %p39 = scmp.eq.s32.totalorder %s23, 1
      %p40 = por %p38, %p39
      %p41 = scmp.ne.s32.totalorder %s33, %s36
      %p42 = scmp.eq.s32.totalorder %s23, 0
      %p43 = por %p41, %p42
      %p44 = scmp.ne.s32.totalorder %s33, %s36
      %p45 = scmp.eq.s32.totalorder %s28, 1
      %p46 = por %p44, %p45
      %p47 = scmp.ne.s32.totalorder %s36, %s37
      %p48 = scmp.eq.s32.totalorder %s28, 0
      %p49 = por %p47, %p48
      %p50 = scmp.ne.s32.totalorder %s36, %s37
      %p51 = scmp.eq.s32.totalorder %s29, 1
      %p52 = por %p50, %p51
      %p54 = scmp.ne.s32.totalorder %s37, %s53
      %p55 = scmp.eq.s32.totalorder %s29, 0
      %p56 = por %p54, %p55
      %s57 = ssub.s32 %s23, %s30
      %p58 = scmp.eq.s32.totalorder %s57, 0
      %s60 = sadd.s32 %s59, 1
      %s61 = scalar_select %p58, %s59, %s60
      %p64 = pneg %p58
      %p65 = scmp.eq.s32.totalorder %s23, 1
      %p66 = por %p64, %p65
      %p67 = scmp.ne.s32.totalorder %s59, %s62
      %p68 = scmp.eq.s32.totalorder %s23, 0
      %p69 = por %p67, %p68
      %p70 = scmp.ne.s32.totalorder %s59, %s62
      %p71 = scmp.eq.s32.totalorder %s28, 1
      %p72 = por %p70, %p71
      %p73 = scmp.ne.s32.totalorder %s62, %s63
      %p74 = scmp.eq.s32.totalorder %s28, 0
      %p75 = por %p73, %p74
      %p76 = scmp.ne.s32.totalorder %s62, %s63
      %p77 = scmp.eq.s32.totalorder %s29, 1
      %p78 = por %p76, %p77
      %p80 = scmp.ne.s32.totalorder %s63, %s79
      %p81 = scmp.eq.s32.totalorder %s29, 0
      %p82 = por %p80, %p81
      %s83 = ssub.s32 %s23, %s30
      %p84 = scmp.eq.s32.totalorder %s83, 0
      %s86 = sadd.s32 %s85, 1
      %s87 = scalar_select %p84, %s85, %s86
      %p90 = pneg %p84
      %p91 = scmp.eq.s32.totalorder %s23, 1
      %p92 = por %p90, %p91
      %p93 = scmp.ne.s32.totalorder %s85, %s88
      %p94 = scmp.eq.s32.totalorder %s23, 0
      %p95 = por %p93, %p94
      %p96 = scmp.ne.s32.totalorder %s85, %s88
      %p97 = scmp.eq.s32.totalorder %s28, 1
      %p98 = por %p96, %p97
      %p99 = scmp.ne.s32.totalorder %s88, %s89
      %p100 = scmp.eq.s32.totalorder %s28, 0
      %p101 = por %p99, %p100
      %p102 = scmp.ne.s32.totalorder %s88, %s89
      %p103 = scmp.eq.s32.totalorder %s29, 1
      %p104 = por %p102, %p103
      %p106 = scmp.ne.s32.totalorder %s89, %s105
      %p107 = scmp.eq.s32.totalorder %s29, 0
      %p108 = por %p106, %p107
      %s110 = sadd.s32 %s109, 1
      %p113 = scmp.eq.s32.totalorder %s23, 1
      %p114 = scmp.ne.s32.totalorder %s109, %s111
      %p115 = scmp.eq.s32.totalorder %s23, 0
      %p116 = por %p114, %p115
      %p117 = scmp.ne.s32.totalorder %s109, %s111
      %p118 = scmp.eq.s32.totalorder %s28, 1
      %p119 = por %p117, %p118
      %p120 = scmp.ne.s32.totalorder %s111, %s112
      %p121 = scmp.eq.s32.totalorder %s28, 0
      %p122 = por %p120, %p121
      %p123 = scmp.ne.s32.totalorder %s111, %s112
      %p124 = scmp.eq.s32.totalorder %s29, 1
      %p125 = por %p123, %p124
      %p127 = scmp.ne.s32.totalorder %s112, %s126
      %p128 = scmp.eq.s32.totalorder %s29, 0
      %p129 = por %p127, %p128
      %s131 = sadd.s32 %s130, 1
      %p134 = scmp.eq.s32.totalorder %s23, 1
      %p135 = scmp.ne.s32.totalorder %s130, %s132
      %p136 = scmp.eq.s32.totalorder %s23, 0
      %p137 = por %p135, %p136
      %p138 = scmp.ne.s32.totalorder %s130, %s132
      %p139 = scmp.eq.s32.totalorder %s28, 1
      %p140 = por %p138, %p139
      %p141 = scmp.ne.s32.totalorder %s132, %s133
      %p142 = scmp.eq.s32.totalorder %s28, 0
      %p143 = por %p141, %p142
      %p144 = scmp.ne.s32.totalorder %s132, %s133
      %p145 = scmp.eq.s32.totalorder %s29, 1
      %p146 = por %p144, %p145
      %p148 = scmp.ne.s32.totalorder %s133, %s147
      %p149 = scmp.eq.s32.totalorder %s29, 0
      %p150 = por %p148, %p149
      %s152 = sadd.s32 %s151, 1
      %p155 = scmp.eq.s32.totalorder %s23, 1
      %p156 = scmp.ne.s32.totalorder %s151, %s153
      %p157 = scmp.eq.s32.totalorder %s23, 0
      %p158 = por %p156, %p157
      %p159 = scmp.ne.s32.totalorder %s151, %s153
      %p160 = scmp.eq.s32.totalorder %s28, 1
      %p161 = por %p159, %p160
      %p162 = scmp.ne.s32.totalorder %s153, %s154
      %p163 = scmp.eq.s32.totalorder %s28, 0
      %p164 = por %p162, %p163
      %p165 = scmp.ne.s32.totalorder %s153, %s154
      %p166 = scmp.eq.s32.totalorder %s29, 1
      %p167 = por %p165, %p166
      %p169 = scmp.ne.s32.totalorder %s154, %s168
      %p170 = scmp.eq.s32.totalorder %s29, 0
      %p171 = por %p169, %p170
      %s172 = ssub.s32 %s23, %s30
      %p173 = scmp.eq.s32.totalorder %s172, 0
      %s175 = sadd.s32 %s174, 1
      %s176 = scalar_select %p173, %s174, %s175
      %p179 = pneg %p173
      %p180 = scmp.eq.s32.totalorder %s23, 1
      %p181 = por %p179, %p180
      %p182 = scmp.ne.s32.totalorder %s174, %s177
      %p183 = scmp.eq.s32.totalorder %s23, 0
      %p184 = por %p182, %p183
      %p185 = scmp.ne.s32.totalorder %s174, %s177
      %p186 = scmp.eq.s32.totalorder %s28, 1
      %p187 = por %p185, %p186
      %p188 = scmp.ne.s32.totalorder %s177, %s178
      %p189 = scmp.eq.s32.totalorder %s28, 0
      %p190 = por %p188, %p189
      %p191 = scmp.ne.s32.totalorder %s177, %s178
      %p192 = scmp.eq.s32.totalorder %s29, 1
      %p193 = por %p191, %p192
      %p195 = scmp.ne.s32.totalorder %s178, %s194
      %p196 = scmp.eq.s32.totalorder %s29, 0
      %p197 = por %p195, %p196
      %p198 = scmp.le.s32.totalorder 1, %s23
      %p199 = scmp.lt.s32.totalorder %s23, 3
      %p200 = pnand %p198, %p199
      %p201 = pneg %p200
      // Predicated region
      $region9: #{tpu_custom_call.1} parent=5 // pred_check
        _
      $region10: #{tpu_custom_call.1} parent=5 // pred_check_branch
        %203 = sbr.rel (%p200) target = $region12
      $region11: #{tpu_custom_call.1} parent=5 // pred_region
        %s204 = ssub.s32 %s23, 1
        // Predicated region
        $region13: #{tpu_custom_call.1} parent=11 // pred_check
          %p205 = pneg %p122
        $region14: #{tpu_custom_call.1} parent=11 // pred_check_branch
          %207 = sbr.rel (%p205) target = $region16
        $region15: #{tpu_custom_call.1} parent=11 // pred_region
          %s209 = ssub.s32 2048, 2048
          %210 = vsyncadd [#allocation9], %s209
          %s211 = sshll.u32 [#allocation8], 4
          %s212 = int_to_ptr.vmem [resolvable:$true] %s211
          %217 = dma.hbm_to_vmem [thread:$0]  %s3, 2048, %s212, [#allocation9], 128, 128, 8
        $region16: #{tpu_custom_call.1} parent=11 // pred_fallthru
          _
        // Predicated region
        $region17: #{tpu_custom_call.1} parent=11 // pred_check
          %p218 = pneg %p143
        $region18: #{tpu_custom_call.1} parent=11 // pred_check_branch
          %220 = sbr.rel (%p218) target = $region20
        $region19: #{tpu_custom_call.1} parent=11 // pred_region
          %s222 = ssub.s32 2048, 2048
          %223 = vsyncadd [#allocation9], %s222
          %s224 = sshll.u32 [#allocation10], 4
          %s225 = int_to_ptr.vmem [resolvable:$true] %s224
          %230 = dma.hbm_to_vmem [thread:$0]  %s4, 2048, %s225, [#allocation9], 128, 128, 8
        $region20: #{tpu_custom_call.1} parent=11 // pred_fallthru
          _
        // Predicated region
        $region21: #{tpu_custom_call.1} parent=11 // pred_check
          %p231 = pneg %p164
        $region22: #{tpu_custom_call.1} parent=11 // pred_check_branch
          %233 = sbr.rel (%p231) target = $region24
        $region23: #{tpu_custom_call.1} parent=11 // pred_region
          %s235 = ssub.s32 4096, 4096
          %236 = vsyncadd [#allocation12], %s235
          %s237 = sshll.u32 [#allocation11], 4
          %s238 = int_to_ptr.vmem [resolvable:$true] %s237
          %243 = dma.hbm_to_vmem [thread:$0]  %s5, 4096, %s238, [#allocation12], 128, 128, 8
        $region24: #{tpu_custom_call.1} parent=11 // pred_fallthru
          _
      $region12: #{tpu_custom_call.1} parent=5 // pred_fallthru
        _
      %p244 = scmp.lt.s32.totalorder %s23, 2
      // Predicated region
      $region25: #{tpu_custom_call.1} parent=5 // pred_check
        %p245 = pneg %p244
      $region26: #{tpu_custom_call.1} parent=5 // pred_check_branch
        %247 = sbr.rel (%p245) target = $region28
      $region27: #{tpu_custom_call.1} parent=5 // pred_region
        // Predicated region
        $region29: #{tpu_custom_call.1} parent=27 // pred_check
          %p248 = pneg %p43
        $region30: #{tpu_custom_call.1} parent=27 // pred_check_branch
          %250 = sbr.rel (%p248) target = $region32
        $region31: #{tpu_custom_call.1} parent=27 // pred_region
          %s251 = sand.u32 %s33, 1
          %s252 = scalar_lea.sflag [#allocation3], %s251
          %s253 = sand.u32 %s33, 1
          %s254 = smul.addr %s253, 128
          %s255 = scalar_lea.vmem [#allocation2], %s254
          %s256 = smul.u32 16, %s23
          %s258 = ssub.s32 2048, 2048
          %259 = vsyncadd %s252, %s258
          %s260 = smul.addr %s256, 128
          %s261 = scalar_lea.hbm %s0, %s260
          %s262 = sshll.u32 %s255, 4
          %s263 = int_to_ptr.vmem [resolvable:$true] %s262
          %268 = dma.hbm_to_vmem [thread:$0]  %s261, 2048, %s263, %s252, 128, 128, 8
        $region32: #{tpu_custom_call.1} parent=27 // pred_fallthru
          _
        // Predicated region
        $region33: #{tpu_custom_call.1} parent=27 // pred_check
          %p269 = pneg %p69
        $region34: #{tpu_custom_call.1} parent=27 // pred_check_branch
          %271 = sbr.rel (%p269) target = $region36
        $region35: #{tpu_custom_call.1} parent=27 // pred_region
          %s272 = sand.u32 %s23, 1
          %s273 = scalar_lea.sflag [#allocation6], %s272
          %s274 = sand.u32 %s59, 1
          %s275 = smul.addr %s274, 128
          %s276 = scalar_lea.vmem [#allocation5], %s275
          %s277 = smul.u32 16, %s23
          %s279 = ssub.s32 2048, 2048
          %280 = vsyncadd %s273, %s279
          %s281 = smul.addr %s277, 128
          %s282 = scalar_lea.hbm %s1, %s281
          %s283 = sshll.u32 %s276, 4
          %s284 = int_to_ptr.vmem [resolvable:$true] %s283
          %289 = dma.hbm_to_vmem [thread:$0]  %s282, 2048, %s284, %s273, 128, 128, 8
        $region36: #{tpu_custom_call.1} parent=27 // pred_fallthru
          _
        // Predicated region
        $region37: #{tpu_custom_call.1} parent=27 // pred_check
          %p290 = pneg %p95
        $region38: #{tpu_custom_call.1} parent=27 // pred_check_branch
          %292 = sbr.rel (%p290) target = $region40
        $region39: #{tpu_custom_call.1} parent=27 // pred_region
          %s293 = sand.u32 %s23, 1
          %s294 = scalar_lea.sflag [#allocation6], %s293
          %s295 = sand.u32 %s85, 1
          %s296 = smul.addr %s295, 256
          %s297 = scalar_lea.vmem [#allocation7], %s296
          %s298 = smul.u32 16, %s23
          %s300 = ssub.s32 4096, 4096
          %301 = vsyncadd %s294, %s300
          %s302 = smul.addr %s298, 2
          %s303 = smul.addr %s302, 128
          %s304 = scalar_lea.hbm %s2, %s303
          %s305 = sshll.u32 %s297, 4
          %s306 = int_to_ptr.vmem [resolvable:$true] %s305
          %311 = dma.hbm_to_vmem [thread:$0]  %s304, 4096, %s306, %s294, 256, 256, 16
        $region40: #{tpu_custom_call.1} parent=27 // pred_fallthru
          _
      $region28: #{tpu_custom_call.1} parent=5 // pred_fallthru
        _
      %p312 = scmp.le.s32.totalorder 1, %s23
      %p313 = scmp.lt.s32.totalorder %s23, 3
      %p314 = pnand %p312, %p313
      %p315 = pneg %p314
      // Predicated region
      $region41: #{tpu_custom_call.1} parent=5 // pred_check
        _
      $region42: #{tpu_custom_call.1} parent=5 // pred_check_branch
        %317 = sbr.rel (%p314) target = $region44
      $region43: #{tpu_custom_call.1} parent=5 // pred_region
        %s318 = ssub.s32 %s23, 1
        %s319 = sand.u32 %s36, 1
        %s320 = scalar_lea.sflag [#allocation3], %s319
        %s321 = sand.u32 %s36, 1
        %s322 = smul.addr %s321, 128
        %s323 = scalar_lea.vmem [#allocation2], %s322
        // Predicated region
        $region45: #{tpu_custom_call.1} parent=43 // pred_check
          %p324 = pneg %p49
        $region46: #{tpu_custom_call.1} parent=43 // pred_check_branch
          %326 = sbr.rel (%p324) target = $region48
        $region47: #{tpu_custom_call.1} parent=43 // pred_region
          %327 = dma.done %s320, 2048
        $region48: #{tpu_custom_call.1} parent=43 // pred_fallthru
          _
        %s328 = sand.u32 %s28, 1
        %s329 = scalar_lea.sflag [#allocation6], %s328
        %s330 = sand.u32 %s62, 1
        %s331 = smul.addr %s330, 128
        %s332 = scalar_lea.vmem [#allocation5], %s331
        // Predicated region
        $region49: #{tpu_custom_call.1} parent=43 // pred_check
          %p333 = pneg %p75
        $region50: #{tpu_custom_call.1} parent=43 // pred_check_branch
          %335 = sbr.rel (%p333) target = $region52
        $region51: #{tpu_custom_call.1} parent=43 // pred_region
          %336 = dma.done %s329, 2048
        $region52: #{tpu_custom_call.1} parent=43 // pred_fallthru
          _
        %s337 = sand.u32 %s28, 1
        %s338 = scalar_lea.sflag [#allocation6], %s337
        %s339 = sand.u32 %s88, 1
        %s340 = smul.addr %s339, 256
        %s341 = scalar_lea.vmem [#allocation7], %s340
        // Predicated region
        $region53: #{tpu_custom_call.1} parent=43 // pred_check
          %p342 = pneg %p101
        $region54: #{tpu_custom_call.1} parent=43 // pred_check_branch
          %344 = sbr.rel (%p342) target = $region56
        $region55: #{tpu_custom_call.1} parent=43 // pred_region
          %345 = dma.done %s338, 4096
        $region56: #{tpu_custom_call.1} parent=43 // pred_fallthru
          _
        // Predicated region
        $region57: #{tpu_custom_call.1} parent=43 // pred_check
          %p346 = pneg %p122
        $region58: #{tpu_custom_call.1} parent=43 // pred_check_branch
          %348 = sbr.rel (%p346) target = $region60
        $region59: #{tpu_custom_call.1} parent=43 // pred_region
          %349 = dma.done [#allocation9], 2048
        $region60: #{tpu_custom_call.1} parent=43 // pred_fallthru
          _
        // Predicated region
        $region61: #{tpu_custom_call.1} parent=43 // pred_check
          %p350 = pneg %p143
        $region62: #{tpu_custom_call.1} parent=43 // pred_check_branch
          %352 = sbr.rel (%p350) target = $region64
        $region63: #{tpu_custom_call.1} parent=43 // pred_region
          %353 = dma.done [#allocation9], 2048
        $region64: #{tpu_custom_call.1} parent=43 // pred_fallthru
          _
        // Predicated region
        $region65: #{tpu_custom_call.1} parent=43 // pred_check
          %p354 = pneg %p164
        $region66: #{tpu_custom_call.1} parent=43 // pred_check_branch
          %356 = sbr.rel (%p354) target = $region68
        $region67: #{tpu_custom_call.1} parent=43 // pred_region
          %357 = dma.done [#allocation12], 4096
        $region68: #{tpu_custom_call.1} parent=43 // pred_fallthru
          _
        %s358 = sand.u32 %s36, 1
        %s359 = scalar_lea.sflag [#allocation3], %s358
        %s360 = sand.u32 %s36, 1
        %s361 = smul.addr %s360, 128
        %s362 = scalar_lea.vmem [#allocation2], %s361
        %p363 = pneg %p49
        %p364 = pneg %p46
        %s365 = sand.u32 %s28, 1
        %s366 = scalar_lea.sflag [#allocation6], %s365
        %s367 = sand.u32 %s62, 1
        %s368 = smul.addr %s367, 128
        %s369 = scalar_lea.vmem [#allocation5], %s368
        %p370 = pneg %p75
        %p371 = pneg %p72
        %s372 = sand.u32 %s28, 1
        %s373 = scalar_lea.sflag [#allocation6], %s372
        %s374 = sand.u32 %s88, 1
        %s375 = smul.addr %s374, 256
        %s376 = scalar_lea.vmem [#allocation7], %s375
        %p377 = pneg %p101
        %p378 = pneg %p98
        %p379 = pneg %p122
        %p380 = pneg %p119
        %p381 = pneg %p143
        %p382 = pneg %p140
        %p383 = pneg %p164
        %p384 = pneg %p161
        %p385 = pneg %p190
        %p386 = pneg %p187
        %s387 = sand.u32 %s177, 1
        %s388 = scalar_lea.sflag [#allocation4], %s387
        %s389 = sand.u32 %s177, 1
        %s390 = smul.addr %s389, 128
        %s391 = scalar_lea.vmem [#allocation13], %s390
        %s392 = smul.u32 16, %s28
        %s393 = smul.u32 16, %s28
        %s394 = smul.u32 16, %s28
        %s395 = smul.u32 16, %s28
        %v396 = vld [vmem:[%s323] sm:$0xff]
        %v397 = vld [vmem:[%s323 + $0x8] sm:$0xff]
        %v398 = vld [vmem:[%s323 + $0x10] sm:$0xff]
        %v399 = vld [vmem:[%s323 + $0x18] sm:$0xff]
        %v400 = vld [vmem:[%s323 + $0x20] sm:$0xff]
        %v401 = vld [vmem:[%s323 + $0x28] sm:$0xff]
        %v402 = vld [vmem:[%s323 + $0x30] sm:$0xff]
        %v403 = vld [vmem:[%s323 + $0x38] sm:$0xff]
        %v404 = vld [vmem:[%s323 + $0x40] sm:$0xff]
        %v405 = vld [vmem:[%s323 + $0x48] sm:$0xff]
        %v406 = vld [vmem:[%s323 + $0x50] sm:$0xff]
        %v407 = vld [vmem:[%s323 + $0x58] sm:$0xff]
        %v408 = vld [vmem:[%s323 + $0x60] sm:$0xff]
        %v409 = vld [vmem:[%s323 + $0x68] sm:$0xff]
        %v410 = vld [vmem:[%s323 + $0x70] sm:$0xff]
        %v411 = vld [vmem:[%s323 + $0x78] sm:$0xff]
        %v412 = vld [vmem:[#allocation8] sm:$0xff]
        %v413 = vld [vmem:[#allocation8 + $0x8] sm:$0xff]
        %v414 = vld [vmem:[#allocation8 + $0x10] sm:$0xff]
        %v415 = vld [vmem:[#allocation8 + $0x18] sm:$0xff]
        %v416 = vld [vmem:[#allocation8 + $0x20] sm:$0xff]
        %v417 = vld [vmem:[#allocation8 + $0x28] sm:$0xff]
        %v418 = vld [vmem:[#allocation8 + $0x30] sm:$0xff]
        %v419 = vld [vmem:[#allocation8 + $0x38] sm:$0xff]
        %v420 = vld [vmem:[#allocation8 + $0x40] sm:$0xff]
        %v421 = vld [vmem:[#allocation8 + $0x48] sm:$0xff]
        %v422 = vld [vmem:[#allocation8 + $0x50] sm:$0xff]
        %v423 = vld [vmem:[#allocation8 + $0x58] sm:$0xff]
        %v424 = vld [vmem:[#allocation8 + $0x60] sm:$0xff]
        %v425 = vld [vmem:[#allocation8 + $0x68] sm:$0xff]
        %v426 = vld [vmem:[#allocation8 + $0x70] sm:$0xff]
        %v427 = vld [vmem:[#allocation8 + $0x78] sm:$0xff]
        %v428 = vld [vmem:[%s332] sm:$0xff]
        %v429 = vld [vmem:[%s332 + $0x8] sm:$0xff]
        %v430 = vld [vmem:[%s332 + $0x10] sm:$0xff]
        %v431 = vld [vmem:[%s332 + $0x18] sm:$0xff]
        %v432 = vld [vmem:[%s332 + $0x20] sm:$0xff]
        %v433 = vld [vmem:[%s332 + $0x28] sm:$0xff]
        %v434 = vld [vmem:[%s332 + $0x30] sm:$0xff]
        %v435 = vld [vmem:[%s332 + $0x38] sm:$0xff]
        %v436 = vld [vmem:[%s332 + $0x40] sm:$0xff]
        %v437 = vld [vmem:[%s332 + $0x48] sm:$0xff]
        %v438 = vld [vmem:[%s332 + $0x50] sm:$0xff]
        %v439 = vld [vmem:[%s332 + $0x58] sm:$0xff]
        %v440 = vld [vmem:[%s332 + $0x60] sm:$0xff]
        %v441 = vld [vmem:[%s332 + $0x68] sm:$0xff]
        %v442 = vld [vmem:[%s332 + $0x70] sm:$0xff]
        %v443 = vld [vmem:[%s332 + $0x78] sm:$0xff]
        %v444 = vld [vmem:[#allocation10] sm:$0xff]
        %v445 = vld [vmem:[#allocation10 + $0x8] sm:$0xff]
        %v446 = vld [vmem:[#allocation10 + $0x10] sm:$0xff]
        %v447 = vld [vmem:[#allocation10 + $0x18] sm:$0xff]
        %v448 = vld [vmem:[#allocation10 + $0x20] sm:$0xff]
        %v449 = vld [vmem:[#allocation10 + $0x28] sm:$0xff]
        %v450 = vld [vmem:[#allocation10 + $0x30] sm:$0xff]
        %v451 = vld [vmem:[#allocation10 + $0x38] sm:$0xff]
        %v452 = vld [vmem:[#allocation10 + $0x40] sm:$0xff]
        %v453 = vld [vmem:[#allocation10 + $0x48] sm:$0xff]
        %v454 = vld [vmem:[#allocation10 + $0x50] sm:$0xff]
        %v455 = vld [vmem:[#allocation10 + $0x58] sm:$0xff]
        %v456 = vld [vmem:[#allocation10 + $0x60] sm:$0xff]
        %v457 = vld [vmem:[#allocation10 + $0x68] sm:$0xff]
        %v458 = vld [vmem:[#allocation10 + $0x70] sm:$0xff]
        %v459 = vld [vmem:[#allocation10 + $0x78] sm:$0xff]
        %460 = vmatprep.subr.mxu0 0.0
        %461 = vmatpush1.msra.mxu0 %v444
        %462 = vmatprep.subr.mxu0 0.0
        %463 = vmatpush1.msra.mxu0 %v445
        %464 = vmatprep.subr.mxu0 0.0
        %465 = vmatpush1.msra.mxu0 %v446
        %466 = vmatprep.subr.mxu0 0.0
        %467 = vmatpush1.msra.mxu0 %v447
        %468 = vmatprep.subr.mxu0 0.0
        %469 = vmatpush1.msra.mxu0 %v448
        %470 = vmatprep.subr.mxu0 0.0
        %471 = vmatpush1.msra.mxu0 %v449
        %472 = vmatprep.subr.mxu0 0.0
        %473 = vmatpush1.msra.mxu0 %v450
        %474 = vmatprep.subr.mxu0 0.0
        %475 = vmatpush1.msra.mxu0 %v451
        %476 = vmatprep.subr.mxu0 0.0
        %477 = vmatpush1.msra.mxu0 %v452
        %478 = vmatprep.subr.mxu0 0.0
        %479 = vmatpush1.msra.mxu0 %v453
        %480 = vmatprep.subr.mxu0 0.0
        %481 = vmatpush1.msra.mxu0 %v454
        %482 = vmatprep.subr.mxu0 0.0
        %483 = vmatpush1.msra.mxu0 %v455
        %484 = vmatprep.subr.mxu0 0.0
        %485 = vmatpush1.msra.mxu0 %v456
        %486 = vmatprep.subr.mxu0 0.0
        %487 = vmatpush1.msra.mxu0 %v457
        %488 = vmatprep.subr.mxu0 0.0
        %489 = vmatpush1.msra.mxu0 %v458
        %490 = vmatprep.subr.mxu0 0.0
        %491 = vmatpush1.msra.mxu0 %v459
        %492 = vmatprep.subr.mxu0 0.0
        %493 = vmatpush1.msra.mxu0 0.0
        %494 = vmatprep.subr.mxu0 0.0
        %495 = vmatpush1.msra.mxu0 0.0
        %496 = vmatprep.subr.mxu0 0.0
        %497 = vmatpush1.msra.mxu0 0.0
        %498 = vmatprep.subr.mxu0 0.0
        %499 = vmatpush1.msra.mxu0 0.0
        %500 = vmatprep.subr.mxu0 0.0
        %501 = vmatpush1.msra.mxu0 0.0
        %502 = vmatprep.subr.mxu0 0.0
        %503 = vmatpush1.msra.mxu0 0.0
        %504 = vmatprep.subr.mxu0 0.0
        %505 = vmatpush1.msra.mxu0 0.0
        %506 = vmatprep.subr.mxu0 0.0
        %507 = vmatpush1.msra.mxu0 0.0
        %508 = vmatprep.subr.mxu0 0.0
        %509 = vmatpush1.msra.mxu0 0.0
        %510 = vmatprep.subr.mxu0 0.0
        %511 = vmatpush1.msra.mxu0 0.0
        %512 = vmatprep.subr.mxu0 0.0
        %513 = vmatpush1.msra.mxu0 0.0
        %514 = vmatprep.subr.mxu0 0.0
        %515 = vmatpush1.msra.mxu0 0.0
        %516 = vmatprep.subr.mxu0 0.0
        %517 = vmatpush1.msra.mxu0 0.0
        %518 = vmatprep.subr.mxu0 0.0
        %519 = vmatpush1.msra.mxu0 0.0
        %520 = vmatprep.subr.mxu0 0.0
        %521 = vmatpush1.msra.mxu0 0.0
        %522 = vmatprep.subr.mxu0 0.0
        %523 = vmatpush1.msra.mxu0 0.0
        %524 = vmatprep.mubr.f32.mxu0 0.0
        %525 = vmatmul.mubr.f32.gmra.mrb[0].mxu0 %v428
        %v526 = vpop.f32.mrb[0].mxu0
        %v527 = vadd.f32 0.0, %v526
        %v528 = vpop.f32.mrb[0].mxu0
        %529 = vmatprep.mubr.f32.mxu0 0.0
        %530 = vmatmul.mubr.f32.gmra.mrb[0].mxu0 %v429
        %v531 = vpop.f32.mrb[0].mxu0
        %v532 = vadd.f32 0.0, %v531
        %v533 = vpop.f32.mrb[0].mxu0
        %534 = vmatprep.mubr.f32.mxu0 0.0
        %535 = vmatmul.mubr.f32.gmra.mrb[0].mxu0 %v430
        %v536 = vpop.f32.mrb[0].mxu0
        %v537 = vadd.f32 0.0, %v536
        %v538 = vpop.f32.mrb[0].mxu0
        %539 = vmatprep.mubr.f32.mxu0 0.0
        %540 = vmatmul.mubr.f32.gmra.mrb[0].mxu0 %v431
        %v541 = vpop.f32.mrb[0].mxu0
        %v542 = vadd.f32 0.0, %v541
        %v543 = vpop.f32.mrb[0].mxu0
        %544 = vmatprep.mubr.f32.mxu0 0.0
        %545 = vmatmul.mubr.f32.gmra.mrb[0].mxu0 %v432
        %v546 = vpop.f32.mrb[0].mxu0
        %v547 = vadd.f32 0.0, %v546
        %v548 = vpop.f32.mrb[0].mxu0
        %549 = vmatprep.mubr.f32.mxu0 0.0
        %550 = vmatmul.mubr.f32.gmra.mrb[0].mxu0 %v433
        %v551 = vpop.f32.mrb[0].mxu0
        %v552 = vadd.f32 0.0, %v551
        %v553 = vpop.f32.mrb[0].mxu0
        %554 = vmatprep.mubr.f32.mxu0 0.0
        %555 = vmatmul.mubr.f32.gmra.mrb[0].mxu0 %v434
        %v556 = vpop.f32.mrb[0].mxu0
        %v557 = vadd.f32 0.0, %v556
        %v558 = vpop.f32.mrb[0].mxu0
        %559 = vmatprep.mubr.f32.mxu0 0.0
        %560 = vmatmul.mubr.f32.gmra.mrb[0].mxu0 %v435
        %v561 = vpop.f32.mrb[0].mxu0
        %v562 = vadd.f32 0.0, %v561
        %v563 = vpop.f32.mrb[0].mxu0
        %564 = vmatprep.mubr.f32.mxu0 0.0
        %565 = vmatmul.mubr.f32.gmra.mrb[0].mxu0 %v436
        %v566 = vpop.f32.mrb[0].mxu0
        %v567 = vadd.f32 0.0, %v566
        %v568 = vpop.f32.mrb[0].mxu0
        %569 = vmatprep.mubr.f32.mxu0 0.0
        %570 = vmatmul.mubr.f32.gmra.mrb[0].mxu0 %v437
        %v571 = vpop.f32.mrb[0].mxu0
        %v572 = vadd.f32 0.0, %v571
        %v573 = vpop.f32.mrb[0].mxu0
        %574 = vmatprep.mubr.f32.mxu0 0.0
        %575 = vmatmul.mubr.f32.gmra.mrb[0].mxu0 %v438
        %v576 = vpop.f32.mrb[0].mxu0
        %v577 = vadd.f32 0.0, %v576
        %v578 = vpop.f32.mrb[0].mxu0
        %579 = vmatprep.mubr.f32.mxu0 0.0
        %580 = vmatmul.mubr.f32.gmra.mrb[0].mxu0 %v439
        %v581 = vpop.f32.mrb[0].mxu0
        %v582 = vadd.f32 0.0, %v581
        %v583 = vpop.f32.mrb[0].mxu0
        %584 = vmatprep.mubr.f32.mxu0 0.0
        %585 = vmatmul.mubr.f32.gmra.mrb[0].mxu0 %v440
        %v586 = vpop.f32.mrb[0].mxu0
        %v587 = vadd.f32 0.0, %v586
        %v588 = vpop.f32.mrb[0].mxu0
        %589 = vmatprep.mubr.f32.mxu0 0.0
        %590 = vmatmul.mubr.f32.gmra.mrb[0].mxu0 %v441
        %v591 = vpop.f32.mrb[0].mxu0
        %v592 = vadd.f32 0.0, %v591
        %v593 = vpop.f32.mrb[0].mxu0
        %594 = vmatprep.mubr.f32.mxu0 0.0
        %595 = vmatmul.mubr.f32.gmra.mrb[0].mxu0 %v442
        %v596 = vpop.f32.mrb[0].mxu0
        %v597 = vadd.f32 0.0, %v596
        %v598 = vpop.f32.mrb[0].mxu0
        %599 = vmatprep.mubr.f32.mxu0 0.0
        %600 = vmatmul.mubr.f32.gmra.mrb[0].mxu0 %v443
        %v601 = vpop.f32.mrb[0].mxu0
        %v602 = vadd.f32 0.0, %v601
        %v603 = vpop.f32.mrb[0].mxu0
        %604 = vdwg.mxu0
        %605 = vmatprep.subr.mxu0 0.0
        %606 = vmatpush1.msra.mxu0 %v412
        %607 = vmatprep.subr.mxu0 0.0
        %608 = vmatpush1.msra.mxu0 %v413
        %609 = vmatprep.subr.mxu0 0.0
        %610 = vmatpush1.msra.mxu0 %v414
        %611 = vmatprep.subr.mxu0 0.0
        %612 = vmatpush1.msra.mxu0 %v415
        %613 = vmatprep.subr.mxu0 0.0
        %614 = vmatpush1.msra.mxu0 %v416
        %615 = vmatprep.subr.mxu0 0.0
        %616 = vmatpush1.msra.mxu0 %v417
        %617 = vmatprep.subr.mxu0 0.0
        %618 = vmatpush1.msra.mxu0 %v418
        %619 = vmatprep.subr.mxu0 0.0
        %620 = vmatpush1.msra.mxu0 %v419
        %621 = vmatprep.subr.mxu0 0.0
        %622 = vmatpush1.msra.mxu0 %v420
        %623 = vmatprep.subr.mxu0 0.0
        %624 = vmatpush1.msra.mxu0 %v421
        %625 = vmatprep.subr.mxu0 0.0
        %626 = vmatpush1.msra.mxu0 %v422
        %627 = vmatprep.subr.mxu0 0.0
        %628 = vmatpush1.msra.mxu0 %v423
        %629 = vmatprep.subr.mxu0 0.0
        %630 = vmatpush1.msra.mxu0 %v424
        %631 = vmatprep.subr.mxu0 0.0
        %632 = vmatpush1.msra.mxu0 %v425
        %633 = vmatprep.subr.mxu0 0.0
        %634 = vmatpush1.msra.mxu0 %v426
        %635 = vmatprep.subr.mxu0 0.0
        %636 = vmatpush1.msra.mxu0 %v427
        %637 = vmatprep.subr.mxu0 0.0
        %638 = vmatpush1.msra.mxu0 0.0
        %639 = vmatprep.subr.mxu0 0.0
        %640 = vmatpush1.msra.mxu0 0.0
        %641 = vmatprep.subr.mxu0 0.0
        %642 = vmatpush1.msra.mxu0 0.0
        %643 = vmatprep.subr.mxu0 0.0
        %644 = vmatpush1.msra.mxu0 0.0
        %645 = vmatprep.subr.mxu0 0.0
        %646 = vmatpush1.msra.mxu0 0.0
        %647 = vmatprep.subr.mxu0 0.0
        %648 = vmatpush1.msra.mxu0 0.0
        %649 = vmatprep.subr.mxu0 0.0
        %650 = vmatpush1.msra.mxu0 0.0
        %651 = vmatprep.subr.mxu0 0.0
        %652 = vmatpush1.msra.mxu0 0.0
        %653 = vmatprep.subr.mxu0 0.0
        %654 = vmatpush1.msra.mxu0 0.0
        %655 = vmatprep.subr.mxu0 0.0
        %656 = vmatpush1.msra.mxu0 0.0
        %657 = vmatprep.subr.mxu0 0.0
        %658 = vmatpush1.msra.mxu0 0.0
        %659 = vmatprep.subr.mxu0 0.0
        %660 = vmatpush1.msra.mxu0 0.0
        %661 = vmatprep.subr.mxu0 0.0
        %662 = vmatpush1.msra.mxu0 0.0
        %663 = vmatprep.subr.mxu0 0.0
        %664 = vmatpush1.msra.mxu0 0.0
        %665 = vmatprep.subr.mxu0 0.0
        %666 = vmatpush1.msra.mxu0 0.0
        %667 = vmatprep.subr.mxu0 0.0
        %668 = vmatpush1.msra.mxu0 0.0
        %669 = vmatprep.mubr.f32.mxu0 0.0
        %670 = vmatmul.mubr.f32.gmra.mrb[0].mxu0 %v396
        %v671 = vpop.f32.mrb[0].mxu0
        %v672 = vadd.f32 %v527, %v671
        %v673 = vpop.f32.mrb[0].mxu0
        %674 = vmatprep.mubr.f32.mxu0 0.0
        %675 = vmatmul.mubr.f32.gmra.mrb[0].mxu0 %v397
        %v676 = vpop.f32.mrb[0].mxu0
        %v677 = vadd.f32 %v532, %v676
        %v678 = vpop.f32.mrb[0].mxu0
        %679 = vmatprep.mubr.f32.mxu0 0.0
        %680 = vmatmul.mubr.f32.gmra.mrb[0].mxu0 %v398
        %v681 = vpop.f32.mrb[0].mxu0
        %v682 = vadd.f32 %v537, %v681
        %v683 = vpop.f32.mrb[0].mxu0
        %684 = vmatprep.mubr.f32.mxu0 0.0
        %685 = vmatmul.mubr.f32.gmra.mrb[0].mxu0 %v399
        %v686 = vpop.f32.mrb[0].mxu0
        %v687 = vadd.f32 %v542, %v686
        %v688 = vpop.f32.mrb[0].mxu0
        %689 = vmatprep.mubr.f32.mxu0 0.0
        %690 = vmatmul.mubr.f32.gmra.mrb[0].mxu0 %v400
        %v691 = vpop.f32.mrb[0].mxu0
        %v692 = vadd.f32 %v547, %v691
        %v693 = vpop.f32.mrb[0].mxu0
        %694 = vmatprep.mubr.f32.mxu0 0.0
        %695 = vmatmul.mubr.f32.gmra.mrb[0].mxu0 %v401
        %v696 = vpop.f32.mrb[0].mxu0
        %v697 = vadd.f32 %v552, %v696
        %v698 = vpop.f32.mrb[0].mxu0
        %699 = vmatprep.mubr.f32.mxu0 0.0
        %700 = vmatmul.mubr.f32.gmra.mrb[0].mxu0 %v402
        %v701 = vpop.f32.mrb[0].mxu0
        %v702 = vadd.f32 %v557, %v701
        %v703 = vpop.f32.mrb[0].mxu0
        %704 = vmatprep.mubr.f32.mxu0 0.0
        %705 = vmatmul.mubr.f32.gmra.mrb[0].mxu0 %v403
        %v706 = vpop.f32.mrb[0].mxu0
        %v707 = vadd.f32 %v562, %v706
        %v708 = vpop.f32.mrb[0].mxu0
        %709 = vmatprep.mubr.f32.mxu0 0.0
        %710 = vmatmul.mubr.f32.gmra.mrb[0].mxu0 %v404
        %v711 = vpop.f32.mrb[0].mxu0
        %v712 = vadd.f32 %v567, %v711
        %v713 = vpop.f32.mrb[0].mxu0
        %714 = vmatprep.mubr.f32.mxu0 0.0
        %715 = vmatmul.mubr.f32.gmra.mrb[0].mxu0 %v405
        %v716 = vpop.f32.mrb[0].mxu0
        %v717 = vadd.f32 %v572, %v716
        %v718 = vpop.f32.mrb[0].mxu0
        %719 = vmatprep.mubr.f32.mxu0 0.0
        %720 = vmatmul.mubr.f32.gmra.mrb[0].mxu0 %v406
        %v721 = vpop.f32.mrb[0].mxu0
        %v722 = vadd.f32 %v577, %v721
        %v723 = vpop.f32.mrb[0].mxu0
        %724 = vmatprep.mubr.f32.mxu0 0.0
        %725 = vmatmul.mubr.f32.gmra.mrb[0].mxu0 %v407
        %v726 = vpop.f32.mrb[0].mxu0
        %v727 = vadd.f32 %v582, %v726
        %v728 = vpop.f32.mrb[0].mxu0
        %729 = vmatprep.mubr.f32.mxu0 0.0
        %730 = vmatmul.mubr.f32.gmra.mrb[0].mxu0 %v408
        %v731 = vpop.f32.mrb[0].mxu0
        %v732 = vadd.f32 %v587, %v731
        %v733 = vpop.f32.mrb[0].mxu0
        %734 = vmatprep.mubr.f32.mxu0 0.0
        %735 = vmatmul.mubr.f32.gmra.mrb[0].mxu0 %v409
        %v736 = vpop.f32.mrb[0].mxu0
        %v737 = vadd.f32 %v592, %v736
        %v738 = vpop.f32.mrb[0].mxu0
        %739 = vmatprep.mubr.f32.mxu0 0.0
        %740 = vmatmul.mubr.f32.gmra.mrb[0].mxu0 %v410
        %v741 = vpop.f32.mrb[0].mxu0
        %v742 = vadd.f32 %v597, %v741
        %v743 = vpop.f32.mrb[0].mxu0
        %744 = vmatprep.mubr.f32.mxu0 0.0
        %745 = vmatmul.mubr.f32.gmra.mrb[0].mxu0 %v411
        %v746 = vpop.f32.mrb[0].mxu0
        %v747 = vadd.f32 %v602, %v746
        %v748 = vpop.f32.mrb[0].mxu0
        %749 = vdwg.mxu0
        %v750 = vld [vmem:[%s341] sm:$0xff]
        %v751 = vld [vmem:[%s341 + $0x8] sm:$0xff]
        %v752 = vld [vmem:[%s341 + $0x10] sm:$0xff]
        %v753 = vld [vmem:[%s341 + $0x18] sm:$0xff]
        %v754 = vld [vmem:[%s341 + $0x20] sm:$0xff]
        %v755 = vld [vmem:[%s341 + $0x28] sm:$0xff]
        %v756 = vld [vmem:[%s341 + $0x30] sm:$0xff]
        %v757 = vld [vmem:[%s341 + $0x38] sm:$0xff]
        %v758 = vld [vmem:[%s341 + $0x40] sm:$0xff]
        %v759 = vld [vmem:[%s341 + $0x48] sm:$0xff]
        %v760 = vld [vmem:[%s341 + $0x50] sm:$0xff]
        %v761 = vld [vmem:[%s341 + $0x58] sm:$0xff]
        %v762 = vld [vmem:[%s341 + $0x60] sm:$0xff]
        %v763 = vld [vmem:[%s341 + $0x68] sm:$0xff]
        %v764 = vld [vmem:[%s341 + $0x70] sm:$0xff]
        %v765 = vld [vmem:[%s341 + $0x78] sm:$0xff]
        %v766 = vld [vmem:[%s341 + $0x80] sm:$0xff]
        %v767 = vld [vmem:[%s341 + $0x88] sm:$0xff]
        %v768 = vld [vmem:[%s341 + $0x90] sm:$0xff]
        %v769 = vld [vmem:[%s341 + $0x98] sm:$0xff]
        %v770 = vld [vmem:[%s341 + $0xa0] sm:$0xff]
        %v771 = vld [vmem:[%s341 + $0xa8] sm:$0xff]
        %v772 = vld [vmem:[%s341 + $0xb0] sm:$0xff]
        %v773 = vld [vmem:[%s341 + $0xb8] sm:$0xff]
        %v774 = vld [vmem:[%s341 + $0xc0] sm:$0xff]
        %v775 = vld [vmem:[%s341 + $0xc8] sm:$0xff]
        %v776 = vld [vmem:[%s341 + $0xd0] sm:$0xff]
        %v777 = vld [vmem:[%s341 + $0xd8] sm:$0xff]
        %v778 = vld [vmem:[%s341 + $0xe0] sm:$0xff]
        %v779 = vld [vmem:[%s341 + $0xe8] sm:$0xff]
        %v780 = vld [vmem:[%s341 + $0xf0] sm:$0xff]
        %v781 = vld [vmem:[%s341 + $0xf8] sm:$0xff]
        %v782 = vld [vmem:[#allocation11] sm:$0xff]
        %v783 = vld [vmem:[#allocation11 + $0x8] sm:$0xff]
        %v784 = vld [vmem:[#allocation11 + $0x10] sm:$0xff]
        %v785 = vld [vmem:[#allocation11 + $0x18] sm:$0xff]
        %v786 = vld [vmem:[#allocation11 + $0x20] sm:$0xff]
        %v787 = vld [vmem:[#allocation11 + $0x28] sm:$0xff]
        %v788 = vld [vmem:[#allocation11 + $0x30] sm:$0xff]
        %v789 = vld [vmem:[#allocation11 + $0x38] sm:$0xff]
        %v790 = vld [vmem:[#allocation11 + $0x40] sm:$0xff]
        %v791 = vld [vmem:[#allocation11 + $0x48] sm:$0xff]
        %v792 = vld [vmem:[#allocation11 + $0x50] sm:$0xff]
        %v793 = vld [vmem:[#allocation11 + $0x58] sm:$0xff]
        %v794 = vld [vmem:[#allocation11 + $0x60] sm:$0xff]
        %v795 = vld [vmem:[#allocation11 + $0x68] sm:$0xff]
        %v796 = vld [vmem:[#allocation11 + $0x70] sm:$0xff]
        %v797 = vld [vmem:[#allocation11 + $0x78] sm:$0xff]
        %v798 = vld [vmem:[#allocation11 + $0x80] sm:$0xff]
        %v799 = vld [vmem:[#allocation11 + $0x88] sm:$0xff]
        %v800 = vld [vmem:[#allocation11 + $0x90] sm:$0xff]
        %v801 = vld [vmem:[#allocation11 + $0x98] sm:$0xff]
        %v802 = vld [vmem:[#allocation11 + $0xa0] sm:$0xff]
        %v803 = vld [vmem:[#allocation11 + $0xa8] sm:$0xff]
        %v804 = vld [vmem:[#allocation11 + $0xb0] sm:$0xff]
        %v805 = vld [vmem:[#allocation11 + $0xb8] sm:$0xff]
        %v806 = vld [vmem:[#allocation11 + $0xc0] sm:$0xff]
        %v807 = vld [vmem:[#allocation11 + $0xc8] sm:$0xff]
        %v808 = vld [vmem:[#allocation11 + $0xd0] sm:$0xff]
        %v809 = vld [vmem:[#allocation11 + $0xd8] sm:$0xff]
        %v810 = vld [vmem:[#allocation11 + $0xe0] sm:$0xff]
        %v811 = vld [vmem:[#allocation11 + $0xe8] sm:$0xff]
        %v812 = vld [vmem:[#allocation11 + $0xf0] sm:$0xff]
        %v813 = vld [vmem:[#allocation11 + $0xf8] sm:$0xff]
        %814 = vmatprep.subr.mxu0 0.0
        %815 = vmatpush1.msra.mxu0 %v782
        %816 = vmatprep.subr.mxu0 0.0
        %817 = vmatpush1.msra.mxu0 %v783
        %818 = vmatprep.subr.mxu0 0.0
        %819 = vmatpush1.msra.mxu0 %v784
        %820 = vmatprep.subr.mxu0 0.0
        %821 = vmatpush1.msra.mxu0 %v785
        %822 = vmatprep.subr.mxu0 0.0
        %823 = vmatpush1.msra.mxu0 %v786
        %824 = vmatprep.subr.mxu0 0.0
        %825 = vmatpush1.msra.mxu0 %v787
        %826 = vmatprep.subr.mxu0 0.0
        %827 = vmatpush1.msra.mxu0 %v788
        %828 = vmatprep.subr.mxu0 0.0
        %829 = vmatpush1.msra.mxu0 %v789
        %830 = vmatprep.subr.mxu0 0.0
        %831 = vmatpush1.msra.mxu0 %v790
        %832 = vmatprep.subr.mxu0 0.0
        %833 = vmatpush1.msra.mxu0 %v791
        %834 = vmatprep.subr.mxu0 0.0
        %835 = vmatpush1.msra.mxu0 %v792
        %836 = vmatprep.subr.mxu0 0.0
        %837 = vmatpush1.msra.mxu0 %v793
        %838 = vmatprep.subr.mxu0 0.0
        %839 = vmatpush1.msra.mxu0 %v794
        %840 = vmatprep.subr.mxu0 0.0
        %841 = vmatpush1.msra.mxu0 %v795
        %842 = vmatprep.subr.mxu0 0.0
        %843 = vmatpush1.msra.mxu0 %v796
        %844 = vmatprep.subr.mxu0 0.0
        %845 = vmatpush1.msra.mxu0 %v797
        %846 = vmatprep.subr.mxu0 0.0
        %847 = vmatpush1.msra.mxu0 %v798
        %848 = vmatprep.subr.mxu0 0.0
        %849 = vmatpush1.msra.mxu0 %v799
        %850 = vmatprep.subr.mxu0 0.0
        %851 = vmatpush1.msra.mxu0 %v800
        %852 = vmatprep.subr.mxu0 0.0
        %853 = vmatpush1.msra.mxu0 %v801
        %854 = vmatprep.subr.mxu0 0.0
        %855 = vmatpush1.msra.mxu0 %v802
        %856 = vmatprep.subr.mxu0 0.0
        %857 = vmatpush1.msra.mxu0 %v803
        %858 = vmatprep.subr.mxu0 0.0
        %859 = vmatpush1.msra.mxu0 %v804
        %860 = vmatprep.subr.mxu0 0.0
        %861 = vmatpush1.msra.mxu0 %v805
        %862 = vmatprep.subr.mxu0 0.0
        %863 = vmatpush1.msra.mxu0 %v806
        %864 = vmatprep.subr.mxu0 0.0
        %865 = vmatpush1.msra.mxu0 %v807
        %866 = vmatprep.subr.mxu0 0.0
        %867 = vmatpush1.msra.mxu0 %v808
        %868 = vmatprep.subr.mxu0 0.0
        %869 = vmatpush1.msra.mxu0 %v809
        %870 = vmatprep.subr.mxu0 0.0
        %871 = vmatpush1.msra.mxu0 %v810
        %872 = vmatprep.subr.mxu0 0.0
        %873 = vmatpush1.msra.mxu0 %v811
        %874 = vmatprep.subr.mxu0 0.0
        %875 = vmatpush1.msra.mxu0 %v812
        %876 = vmatprep.subr.mxu0 0.0
        %877 = vmatpush1.msra.mxu0 %v813
        %878 = vmatprep.mubr.f32.mxu0 %v751
        %879 = vmatmul.mubr.f32.gmra.mrb[0].mxu0 %v750
        %v880 = vpop.f32.mrb[0].mxu0
        %v881 = vadd.f32 0.0, %v880
        %v882 = vpop.f32.mrb[0].mxu0
        %883 = vmatprep.mubr.f32.mxu0 %v753
        %884 = vmatmul.mubr.f32.gmra.mrb[0].mxu0 %v752
        %v885 = vpop.f32.mrb[0].mxu0
        %v886 = vadd.f32 0.0, %v885
        %v887 = vpop.f32.mrb[0].mxu0
        %888 = vmatprep.mubr.f32.mxu0 %v755
        %889 = vmatmul.mubr.f32.gmra.mrb[0].mxu0 %v754
        %v890 = vpop.f32.mrb[0].mxu0
        %v891 = vadd.f32 0.0, %v890
        %v892 = vpop.f32.mrb[0].mxu0
        %893 = vmatprep.mubr.f32.mxu0 %v757
        %894 = vmatmul.mubr.f32.gmra.mrb[0].mxu0 %v756
        %v895 = vpop.f32.mrb[0].mxu0
        %v896 = vadd.f32 0.0, %v895
        %v897 = vpop.f32.mrb[0].mxu0
        %898 = vmatprep.mubr.f32.mxu0 %v759
        %899 = vmatmul.mubr.f32.gmra.mrb[0].mxu0 %v758
        %v900 = vpop.f32.mrb[0].mxu0
        %v901 = vadd.f32 0.0, %v900
        %v902 = vpop.f32.mrb[0].mxu0
        %903 = vmatprep.mubr.f32.mxu0 %v761
        %904 = vmatmul.mubr.f32.gmra.mrb[0].mxu0 %v760
        %v905 = vpop.f32.mrb[0].mxu0
        %v906 = vadd.f32 0.0, %v905
        %v907 = vpop.f32.mrb[0].mxu0
        %908 = vmatprep.mubr.f32.mxu0 %v763
        %909 = vmatmul.mubr.f32.gmra.mrb[0].mxu0 %v762
        %v910 = vpop.f32.mrb[0].mxu0
        %v911 = vadd.f32 0.0, %v910
        %v912 = vpop.f32.mrb[0].mxu0
        %913 = vmatprep.mubr.f32.mxu0 %v765
        %914 = vmatmul.mubr.f32.gmra.mrb[0].mxu0 %v764
        %v915 = vpop.f32.mrb[0].mxu0
        %v916 = vadd.f32 0.0, %v915
        %v917 = vpop.f32.mrb[0].mxu0
        %918 = vmatprep.mubr.f32.mxu0 %v767
        %919 = vmatmul.mubr.f32.gmra.mrb[0].mxu0 %v766
        %v920 = vpop.f32.mrb[0].mxu0
        %v921 = vadd.f32 0.0, %v920
        %v922 = vpop.f32.mrb[0].mxu0
        %923 = vmatprep.mubr.f32.mxu0 %v769
        %924 = vmatmul.mubr.f32.gmra.mrb[0].mxu0 %v768
        %v925 = vpop.f32.mrb[0].mxu0
        %v926 = vadd.f32 0.0, %v925
        %v927 = vpop.f32.mrb[0].mxu0
        %928 = vmatprep.mubr.f32.mxu0 %v771
        %929 = vmatmul.mubr.f32.gmra.mrb[0].mxu0 %v770
        %v930 = vpop.f32.mrb[0].mxu0
        %v931 = vadd.f32 0.0, %v930
        %v932 = vpop.f32.mrb[0].mxu0
        %933 = vmatprep.mubr.f32.mxu0 %v773
        %934 = vmatmul.mubr.f32.gmra.mrb[0].mxu0 %v772
        %v935 = vpop.f32.mrb[0].mxu0
        %v936 = vadd.f32 0.0, %v935
        %v937 = vpop.f32.mrb[0].mxu0
        %938 = vmatprep.mubr.f32.mxu0 %v775
        %939 = vmatmul.mubr.f32.gmra.mrb[0].mxu0 %v774
        %v940 = vpop.f32.mrb[0].mxu0
        %v941 = vadd.f32 0.0, %v940
        %v942 = vpop.f32.mrb[0].mxu0
        %943 = vmatprep.mubr.f32.mxu0 %v777
        %944 = vmatmul.mubr.f32.gmra.mrb[0].mxu0 %v776
        %v945 = vpop.f32.mrb[0].mxu0
        %v946 = vadd.f32 0.0, %v945
        %v947 = vpop.f32.mrb[0].mxu0
        %948 = vmatprep.mubr.f32.mxu0 %v779
        %949 = vmatmul.mubr.f32.gmra.mrb[0].mxu0 %v778
        %v950 = vpop.f32.mrb[0].mxu0
        %v951 = vadd.f32 0.0, %v950
        %v952 = vpop.f32.mrb[0].mxu0
        %953 = vmatprep.mubr.f32.mxu0 %v781
        %954 = vmatmul.mubr.f32.gmra.mrb[0].mxu0 %v780
        %v955 = vpop.f32.mrb[0].mxu0
        %v956 = vadd.f32 0.0, %v955
        %v957 = vpop.f32.mrb[0].mxu0
        %958 = vdwg.mxu0
        %v959 = vadd.f32 %v672, %v881
        %v960 = vadd.f32 %v677, %v886
        %v961 = vadd.f32 %v682, %v891
        %v962 = vadd.f32 %v687, %v896
        %v963 = vadd.f32 %v692, %v901
        %v964 = vadd.f32 %v697, %v906
        %v965 = vadd.f32 %v702, %v911
        %v966 = vadd.f32 %v707, %v916
        %v967 = vadd.f32 %v712, %v921
        %v968 = vadd.f32 %v717, %v926
        %v969 = vadd.f32 %v722, %v931
        %v970 = vadd.f32 %v727, %v936
        %v971 = vadd.f32 %v732, %v941
        %v972 = vadd.f32 %v737, %v946
        %v973 = vadd.f32 %v742, %v951
        %v974 = vadd.f32 %v747, %v956
        %v975 = vmax.f32 %v959, 0.0
        %v976 = vmax.f32 %v960, 0.0
        %v977 = vmax.f32 %v961, 0.0
        %v978 = vmax.f32 %v962, 0.0
        %v979 = vmax.f32 %v963, 0.0
        %v980 = vmax.f32 %v964, 0.0
        %v981 = vmax.f32 %v965, 0.0
        %v982 = vmax.f32 %v966, 0.0
        %v983 = vmax.f32 %v967, 0.0
        %v984 = vmax.f32 %v968, 0.0
        %v985 = vmax.f32 %v969, 0.0
        %v986 = vmax.f32 %v970, 0.0
        %v987 = vmax.f32 %v971, 0.0
        %v988 = vmax.f32 %v972, 0.0
        %v989 = vmax.f32 %v973, 0.0
        %v990 = vmax.f32 %v974, 0.0
        %991 = vst [vmem:[%s391] sm:$0xff] %v975
        %992 = vst [vmem:[%s391 + $0x8] sm:$0xff] %v976
        %993 = vst [vmem:[%s391 + $0x10] sm:$0xff] %v977
        %994 = vst [vmem:[%s391 + $0x18] sm:$0xff] %v978
        %995 = vst [vmem:[%s391 + $0x20] sm:$0xff] %v979
        %996 = vst [vmem:[%s391 + $0x28] sm:$0xff] %v980
        %997 = vst [vmem:[%s391 + $0x30] sm:$0xff] %v981
        %998 = vst [vmem:[%s391 + $0x38] sm:$0xff] %v982
        %999 = vst [vmem:[%s391 + $0x40] sm:$0xff] %v983
        %1000 = vst [vmem:[%s391 + $0x48] sm:$0xff] %v984
        %1001 = vst [vmem:[%s391 + $0x50] sm:$0xff] %v985
        %1002 = vst [vmem:[%s391 + $0x58] sm:$0xff] %v986
        %1003 = vst [vmem:[%s391 + $0x60] sm:$0xff] %v987
        %1004 = vst [vmem:[%s391 + $0x68] sm:$0xff] %v988
        %1005 = vst [vmem:[%s391 + $0x70] sm:$0xff] %v989
        %1006 = vst [vmem:[%s391 + $0x78] sm:$0xff] %v990
        %s1007 = sand.u32 %s177, 1
        %s1008 = scalar_lea.sflag [#allocation4], %s1007
        %s1009 = sand.u32 %s177, 1
        %s1010 = smul.addr %s1009, 128
        %s1011 = scalar_lea.vmem [#allocation13], %s1010
        // Predicated region
        $region69: #{tpu_custom_call.1} parent=43 // pred_check
          %p1012 = pneg %p187
        $region70: #{tpu_custom_call.1} parent=43 // pred_check_branch
          %1014 = sbr.rel (%p1012) target = $region72
        $region71: #{tpu_custom_call.1} parent=43 // pred_region
          %s1015 = smul.u32 16, %s28
          %s1017 = ssub.s32 2048, 2048
          %1018 = vsyncadd %s1008, %s1017
          %s1019 = smul.addr %s1015, 128
          %s1020 = scalar_lea.hbm %s6, %s1019
          %s1021 = sshll.u32 %s1011, 4
          %s1022 = int_to_ptr.vmem [resolvable:$true] %s1021
          %1027 = dma.vmem_to_hbm [thread:$0]  %s1022, 2048, %s1020, %s1008, 128, 128, 8
        $region72: #{tpu_custom_call.1} parent=43 // pred_fallthru
          _
      $region44: #{tpu_custom_call.1} parent=5 // pred_fallthru
        _
      %p1028 = scmp.le.s32.totalorder 2, %s23
      // Predicated region
      $region73: #{tpu_custom_call.1} parent=5 // pred_check
        %p1029 = pneg %p1028
      $region74: #{tpu_custom_call.1} parent=5 // pred_check_branch
        %1031 = sbr.rel (%p1029) target = $region76
      $region75: #{tpu_custom_call.1} parent=5 // pred_region
        %s1032 = ssub.s32 %s23, 2
        // Predicated region
        $region77: #{tpu_custom_call.1} parent=75 // pred_check
          %p1033 = pneg %p193
        $region78: #{tpu_custom_call.1} parent=75 // pred_check_branch
          %1035 = sbr.rel (%p1033) target = $region80
        $region79: #{tpu_custom_call.1} parent=75 // pred_region
          %s1036 = sand.u32 %s178, 1
          %s1037 = scalar_lea.sflag [#allocation4], %s1036
          %s1038 = sand.u32 %s178, 1
          %s1039 = smul.addr %s1038, 128
          %s1040 = scalar_lea.vmem [#allocation13], %s1039
          %1041 = dma.done %s1037, 2048
        $region80: #{tpu_custom_call.1} parent=75 // pred_fallthru
          _
      $region76: #{tpu_custom_call.1} parent=5 // pred_fallthru
        _
    $region6: #{tpu_custom_call.1} parent=1 // loop_footer
      %s27 = sadd.s32 1, %s23
    $region7: #{tpu_custom_call.1} parent=1 // loop_footer_branch
      %22 = sbr.rel target = $region3
    $region8: #{tpu_custom_call.1} parent=1 // loop_exit
      _
    %1042 = vsyncpa [#allocation3], 1
    %s1043 = scalar_lea.sflag [#allocation3], 1
    %1044 = vsyncpa %s1043, 1
    %1045 = vsyncpa [#allocation6], 1
    %s1046 = scalar_lea.sflag [#allocation6], 1
    %1047 = vsyncpa %s1046, 1
    %1048 = vsyncpa [#allocation9], 1
    %1049 = vsyncpa [#allocation12], 1
    %1050 = vsyncpa [#allocation4], 1
    %s1051 = scalar_lea.sflag [#allocation4], 1
    %1052 = vsyncpa %s1051, 1

</llo_original>
